<compile_context>
chip_gen: v7x
topology: tpu7x:2x2x1
jax: 0.10.0
libtpu: 0.0.40
codegen_flags: <defaults>
</compile_context>

<pallas_src>
import functools

import jax
import jax.numpy as jnp
from jax.experimental import pallas as pl
from jax.experimental.pallas import tpu as pltpu

LANE = 128
DATA_DIM = 12    # stand-in for out_dim = data.shape[1]
H_DIM = 128      # stand-in for h_dim = 800 (kept 128-aligned)
D_DIM = 1        # D head width
Q_DIM = 3        # Q head width
HEAD_PAD = 128   # packed lane-dense head width (D | Q | zeros)


def _round_up(x, m):
    return (x + m - 1) // m * m


def _disc_kernel(x_ref, w1_ref, b1_ref, w2_ref, b2_ref, w3_ref, b3_ref,
                 wh_ref, bh_ref, o_ref):
    # Trunk: three Linear + ReLU layers, all on the MXU with f32 accumulation.
    h = jnp.dot(x_ref[...], w1_ref[...], preferred_element_type=jnp.float32)
    h = jnp.maximum(h + b1_ref[...], 0.0)
    h = jnp.dot(h, w2_ref[...], preferred_element_type=jnp.float32)
    h = jnp.maximum(h + b2_ref[...], 0.0)
    h = jnp.dot(h, w3_ref[...], preferred_element_type=jnp.float32)
    h = jnp.maximum(h + b3_ref[...], 0.0)

    # Fused lane-dense head: col 0 = D logit, cols 1..3 = Q logits, remaining
    # cols are zero padding (zero weights / zero bias).  One full, unmasked
    # 128-wide store; D sigmoid + slicing happens in the wrapper.
    y = jnp.dot(h, wh_ref[...], preferred_element_type=jnp.float32) + bh_ref[...]
    o_ref[...] = y.astype(o_ref.dtype)


def pack_params(params, head_pad=HEAD_PAD):
    """One-time packing of raw params into the kernel's layout (hoisted out of
    the per-call forward per the performance review)."""
    w1, b1, w2, b2, w3, b3, wd, bd, wq, bq = params
    h = w1.shape[1]
    zpad = head_pad - (D_DIM + Q_DIM)
    wh = jnp.concatenate([wd, wq, jnp.zeros((h, zpad), w1.dtype)], axis=1)
    bh = jnp.concatenate([bd, bq, jnp.zeros((1, zpad), b1.dtype)], axis=1)
    return (w1, b1, w2, b2, w3, b3, wh, bh)


@functools.partial(jax.jit, static_argnames=("block_b",))
def discriminator_forward(x, packed_params, *, block_b=None):
    """x: (B, data_dim) f32 -> (D: (B,) f32 in (0,1), Q: (B, 3) f32)."""
    w1, b1, w2, b2, w3, b3, wh, bh = packed_params
    B, data_dim = x.shape
    h = w1.shape[1]
    head_pad = wh.shape[1]

    if block_b is None:
        # Small-batch default: a single grid step covering the whole batch
        # (per-grid-step overhead ~0.35 us; weights resident once).
        block_b = _round_up(max(B, 8), 8)
    grid = (pl.cdiv(B, block_b),)

    def bcast(shape):
        # Whole parameter resident every grid step (constant index map).
        return pl.BlockSpec(shape, lambda i: (0, 0))

    flops = 2 * B * (data_dim * h + 2 * h * h + h * head_pad)
    bytes_accessed = 4 * (B * (data_dim + head_pad)
                          + data_dim * h + 2 * h * h + h * head_pad
                          + 3 * h + head_pad)
    cost = pl.CostEstimate(flops=flops, transcendentals=0,
                           bytes_accessed=bytes_accessed)

    # Only raise the scoped-VMEM limit when the double-buffered working set
    # would not fit the default (matters for the real h_dim=800, not h=128).
    weight_bytes = 4 * (data_dim * h + 2 * h * h + h * head_pad + 3 * h + head_pad)
    act_bytes = 4 * block_b * (data_dim + head_pad + 2 * h)
    working_set = 2 * weight_bytes + 2 * act_bytes
    vmem_limit = None
    if working_set > (24 << 20):
        vmem_limit = min(96 << 20, _round_up(working_set + (8 << 20), 1 << 20))

    out = pl.pallas_call(
        _disc_kernel,
        out_shape=jax.ShapeDtypeStruct((B, head_pad), x.dtype),
        grid_spec=pltpu.PrefetchScalarGridSpec(
            num_scalar_prefetch=0,
            grid=grid,
            in_specs=[
                pl.BlockSpec((block_b, data_dim), lambda i: (i, 0)),  # x tile
                bcast((data_dim, h)), bcast((1, h)),
                bcast((h, h)),        bcast((1, h)),
                bcast((h, h)),        bcast((1, h)),
                bcast((h, head_pad)), bcast((1, head_pad)),
            ],
            out_specs=pl.BlockSpec((block_b, head_pad), lambda i: (i, 0)),
        ),
        compiler_params=pltpu.CompilerParams(
            dimension_semantics=("parallel",),
            vmem_limit_bytes=vmem_limit),
        cost_estimate=cost,
    )(x, w1, b1, w2, b2, w3, b3, wh, bh)

    d = jax.nn.sigmoid(out[:, 0])        # (B,)  == D_net(x).view(-1)
    q = out[:, D_DIM:D_DIM + Q_DIM]      # (B, 3) == Q_net(x)
    return d, q


def init_params(key, data_dim, h_dim):
    """nn.Linear-style init U(-1/sqrt(fan_in), 1/sqrt(fan_in)).

    Weights stored as (in_features, out_features) (transpose of PyTorch) so
    the kernel computes x @ W directly.
    """
    params = []
    layer_dims = [(data_dim, h_dim), (h_dim, h_dim), (h_dim, h_dim),  # trunk
                  (h_dim, D_DIM), (h_dim, Q_DIM)]                      # heads
    for fan_in, fan_out in layer_dims:
        key, kw, kb = jax.random.split(key, 3)
        bound = 1.0 / jnp.sqrt(float(fan_in))
        w = jax.random.uniform(kw, (fan_in, fan_out), jnp.float32,
                               minval=-bound, maxval=bound)
        b = jax.random.uniform(kb, (1, fan_out), jnp.float32,
                               minval=-bound, maxval=bound)
        params.extend([w, b])
    return tuple(params)


def reference_forward(x, params):
    w1, b1, w2, b2, w3, b3, wd, bd, wq, bq = params
    h = jnp.maximum(x @ w1 + b1, 0.0)
    h = jnp.maximum(h @ w2 + b2, 0.0)
    h = jnp.maximum(h @ w3 + b3, 0.0)
    d = jax.nn.sigmoid(h @ wd + bd).reshape(-1)
    q = h @ wq + bq
    return d, q


if __name__ == "__main__":
    key = jax.random.PRNGKey(0)
    key, kx = jax.random.split(key)

    batch = 200
    x = jax.random.normal(kx, (batch, DATA_DIM), jnp.float32)
    params = init_params(key, DATA_DIM, H_DIM)

    # One-time parameter packing (hoisted out of the per-call forward).
    packed = pack_params(params)
    packed = jax.block_until_ready(packed)

    d_out, q_out = discriminator_forward(x, packed)
    d_out = jax.block_until_ready(d_out)
    q_out = jax.block_until_ready(q_out)

    d_ref, q_ref = reference_forward(x, params)
    assert d_out.shape == (batch,)
    assert q_out.shape == (batch, Q_DIM)
    assert jnp.allclose(d_out, d_ref, atol=1e-4, rtol=1e-4), "D head mismatch"
    assert jnp.allclose(q_out, q_ref, atol=1e-4, rtol=1e-4), "Q head mismatch"

    print("KERNEL_OK")
</pallas_src>

<mosaic_0001>
module attributes {stable_mosaic.version = 11 : i64} {
  func.func @_disc_kernel(%arg0: i32, %arg1: memref<200x12xf32, #tpu.memory_space<vmem>>, %arg2: memref<12x128xf32, #tpu.memory_space<vmem>>, %arg3: memref<1x128xf32, #tpu.memory_space<vmem>>, %arg4: memref<128x128xf32, #tpu.memory_space<vmem>>, %arg5: memref<1x128xf32, #tpu.memory_space<vmem>>, %arg6: memref<128x128xf32, #tpu.memory_space<vmem>>, %arg7: memref<1x128xf32, #tpu.memory_space<vmem>>, %arg8: memref<128x128xf32, #tpu.memory_space<vmem>>, %arg9: memref<1x128xf32, #tpu.memory_space<vmem>>, %arg10: memref<200x128xf32, #tpu.memory_space<vmem>>) attributes {dimension_semantics = [#tpu.dimension_semantics<parallel>], iteration_bounds = array<i64: 1>, scalar_prefetch = 0 : i64, scratch_operands = 0 : i64, tpu.core_type = #tpu.core_type<tc>, window_params = [{transform_indices = @transform_0, window_bounds = array<i64: 200, 12>}, {pipeline_mode = #tpu.pipeline_mode<synchronous>, transform_indices = @transform_1, window_bounds = array<i64: 12, 128>}, {pipeline_mode = #tpu.pipeline_mode<synchronous>, transform_indices = @transform_2, window_bounds = array<i64: 1, 128>}, {pipeline_mode = #tpu.pipeline_mode<synchronous>, transform_indices = @transform_3, window_bounds = array<i64: 128, 128>}, {pipeline_mode = #tpu.pipeline_mode<synchronous>, transform_indices = @transform_4, window_bounds = array<i64: 1, 128>}, {pipeline_mode = #tpu.pipeline_mode<synchronous>, transform_indices = @transform_5, window_bounds = array<i64: 128, 128>}, {pipeline_mode = #tpu.pipeline_mode<synchronous>, transform_indices = @transform_6, window_bounds = array<i64: 1, 128>}, {pipeline_mode = #tpu.pipeline_mode<synchronous>, transform_indices = @transform_7, window_bounds = array<i64: 128, 128>}, {pipeline_mode = #tpu.pipeline_mode<synchronous>, transform_indices = @transform_8, window_bounds = array<i64: 1, 128>}, {transform_indices = @transform_9, window_bounds = array<i64: 200, 128>}]} {
    %c0 = arith.constant 0 : index
    %c0_0 = arith.constant 0 : index
    %0 = vector.load %arg1[%c0, %c0_0] : memref<200x12xf32, #tpu.memory_space<vmem>>, vector<200x12xf32>
    %c0_1 = arith.constant 0 : index
    %c0_2 = arith.constant 0 : index
    %1 = vector.load %arg2[%c0_1, %c0_2] : memref<12x128xf32, #tpu.memory_space<vmem>>, vector<12x128xf32>
    %cst = arith.constant dense<0.000000e+00> : vector<200x128xf32>
    %2 = tpu.matmul %0, %1, %cst {dimension_numbers = #tpu.dot_dimension_numbers<[1], [0], [0], [1], [0, 0, 1, 1], [], []>} : vector<200x12xf32>, vector<12x128xf32>, vector<200x128xf32> -> vector<200x128xf32>
    %c0_3 = arith.constant 0 : index
    %c0_4 = arith.constant 0 : index
    %3 = vector.load %arg3[%c0_3, %c0_4] : memref<1x128xf32, #tpu.memory_space<vmem>>, vector<1x128xf32>
    %4 = vector.broadcast %3 : vector<1x128xf32> to vector<200x128xf32>
    %5 = arith.addf %2, %4 : vector<200x128xf32>
    %cst_5 = arith.constant 0.000000e+00 : f32
    %6 = vector.broadcast %cst_5 : f32 to vector<200x128xf32>
    %7 = arith.maximumf %5, %6 : vector<200x128xf32>
    %c0_6 = arith.constant 0 : index
    %c0_7 = arith.constant 0 : index
    %8 = vector.load %arg4[%c0_6, %c0_7] : memref<128x128xf32, #tpu.memory_space<vmem>>, vector<128x128xf32>
    %cst_8 = arith.constant dense<0.000000e+00> : vector<200x128xf32>
    %9 = tpu.matmul %7, %8, %cst_8 {dimension_numbers = #tpu.dot_dimension_numbers<[1], [0], [0], [1], [0, 0, 1, 1], [], []>} : vector<200x128xf32>, vector<128x128xf32>, vector<200x128xf32> -> vector<200x128xf32>
    %c0_9 = arith.constant 0 : index
    %c0_10 = arith.constant 0 : index
    %10 = vector.load %arg5[%c0_9, %c0_10] : memref<1x128xf32, #tpu.memory_space<vmem>>, vector<1x128xf32>
    %11 = vector.broadcast %10 : vector<1x128xf32> to vector<200x128xf32>
    %12 = arith.addf %9, %11 : vector<200x128xf32>
    %cst_11 = arith.constant 0.000000e+00 : f32
    %13 = vector.broadcast %cst_11 : f32 to vector<200x128xf32>
    %14 = arith.maximumf %12, %13 : vector<200x128xf32>
    %c0_12 = arith.constant 0 : index
    %c0_13 = arith.constant 0 : index
    %15 = vector.load %arg6[%c0_12, %c0_13] : memref<128x128xf32, #tpu.memory_space<vmem>>, vector<128x128xf32>
    %cst_14 = arith.constant dense<0.000000e+00> : vector<200x128xf32>
    %16 = tpu.matmul %14, %15, %cst_14 {dimension_numbers = #tpu.dot_dimension_numbers<[1], [0], [0], [1], [0, 0, 1, 1], [], []>} : vector<200x128xf32>, vector<128x128xf32>, vector<200x128xf32> -> vector<200x128xf32>
    %c0_15 = arith.constant 0 : index
    %c0_16 = arith.constant 0 : index
    %17 = vector.load %arg7[%c0_15, %c0_16] : memref<1x128xf32, #tpu.memory_space<vmem>>, vector<1x128xf32>
    %18 = vector.broadcast %17 : vector<1x128xf32> to vector<200x128xf32>
    %19 = arith.addf %16, %18 : vector<200x128xf32>
    %cst_17 = arith.constant 0.000000e+00 : f32
    %20 = vector.broadcast %cst_17 : f32 to vector<200x128xf32>
    %21 = arith.maximumf %19, %20 : vector<200x128xf32>
    %c0_18 = arith.constant 0 : index
    %c0_19 = arith.constant 0 : index
    %22 = vector.load %arg8[%c0_18, %c0_19] : memref<128x128xf32, #tpu.memory_space<vmem>>, vector<128x128xf32>
    %cst_20 = arith.constant dense<0.000000e+00> : vector<200x128xf32>
    %23 = tpu.matmul %21, %22, %cst_20 {dimension_numbers = #tpu.dot_dimension_numbers<[1], [0], [0], [1], [0, 0, 1, 1], [], []>} : vector<200x128xf32>, vector<128x128xf32>, vector<200x128xf32> -> vector<200x128xf32>
    %c0_21 = arith.constant 0 : index
    %c0_22 = arith.constant 0 : index
    %24 = vector.load %arg9[%c0_21, %c0_22] : memref<1x128xf32, #tpu.memory_space<vmem>>, vector<1x128xf32>
    %25 = vector.broadcast %24 : vector<1x128xf32> to vector<200x128xf32>
    %26 = arith.addf %23, %25 : vector<200x128xf32>
    %c0_23 = arith.constant 0 : index
    %c0_24 = arith.constant 0 : index
    %27 = vector.load %arg10[%c0_23, %c0_24] : memref<200x128xf32, #tpu.memory_space<vmem>>, vector<200x128xf32>
    tpu.vector_store %arg10[%c0_23, %c0_24], %26 {strides = array<i32>} : memref<200x128xf32, #tpu.memory_space<vmem>>, vector<200x128xf32>,
    return
  }
  func.func @transform_0(%arg0: i32) -> (i32, i32) {
    %c0_i32 = arith.constant 0 : i32
    %c0_i32_0 = arith.constant 0 : i32
    return %arg0, %c0_i32 : i32, i32
  }
  func.func @transform_1(%arg0: i32) -> (i32, i32) {
    %c0_i32 = arith.constant 0 : i32
    %c0_i32_0 = arith.constant 0 : i32
    %c0_i32_1 = arith.constant 0 : i32
    return %c0_i32, %c0_i32_0 : i32, i32
  }
  func.func @transform_2(%arg0: i32) -> (i32, i32) {
    %c0_i32 = arith.constant 0 : i32
    %c0_i32_0 = arith.constant 0 : i32
    %c0_i32_1 = arith.constant 0 : i32
    return %c0_i32, %c0_i32_0 : i32, i32
  }
  func.func @transform_3(%arg0: i32) -> (i32, i32) {
    %c0_i32 = arith.constant 0 : i32
    %c0_i32_0 = arith.constant 0 : i32
    %c0_i32_1 = arith.constant 0 : i32
    return %c0_i32, %c0_i32_0 : i32, i32
  }
  func.func @transform_4(%arg0: i32) -> (i32, i32) {
    %c0_i32 = arith.constant 0 : i32
    %c0_i32_0 = arith.constant 0 : i32
    %c0_i32_1 = arith.constant 0 : i32
    return %c0_i32, %c0_i32_0 : i32, i32
  }
  func.func @transform_5(%arg0: i32) -> (i32, i32) {
    %c0_i32 = arith.constant 0 : i32
    %c0_i32_0 = arith.constant 0 : i32
    %c0_i32_1 = arith.constant 0 : i32
    return %c0_i32, %c0_i32_0 : i32, i32
  }
  func.func @transform_6(%arg0: i32) -> (i32, i32) {
    %c0_i32 = arith.constant 0 : i32
    %c0_i32_0 = arith.constant 0 : i32
    %c0_i32_1 = arith.constant 0 : i32
    return %c0_i32, %c0_i32_0 : i32, i32
  }
  func.func @transform_7(%arg0: i32) -> (i32, i32) {
    %c0_i32 = arith.constant 0 : i32
    %c0_i32_0 = arith.constant 0 : i32
    %c0_i32_1 = arith.constant 0 : i32
    return %c0_i32, %c0_i32_0 : i32, i32
  }
  func.func @transform_8(%arg0: i32) -> (i32, i32) {
    %c0_i32 = arith.constant 0 : i32
    %c0_i32_0 = arith.constant 0 : i32
    %c0_i32_1 = arith.constant 0 : i32
    return %c0_i32, %c0_i32_0 : i32, i32
  }
  func.func @transform_9(%arg0: i32) -> (i32, i32) {
    %c0_i32 = arith.constant 0 : i32
    %c0_i32_0 = arith.constant 0 : i32
    return %arg0, %c0_i32 : i32, i32
  }
}

</mosaic_0001>

<llo_original>
// kernel: discriminator_forward.1
$region0: #{discriminator_forward.1}
  #allocation0 [shape = 'u32[]', space=smem, size = 0x4, offset = 0x4, fixed_abs, tag = 'smem constant byte address 0x4 - core index']
  #allocation1 [shape = 'u32[144,128]{1,0:T(1,128)}', space=vmem, size = 0x12000, scoped, tag = 'internal scratch']
  %s0 = inlined_call_operand.vmem [shape: f32[200,12], index: 0, kind: input, shape index: {}]
  %s1 = inlined_call_operand.hbm [shape: f32[12,128], index: 1, kind: input, shape index: {}]
  %s2 = inlined_call_operand.vmem [shape: f32[1,128], index: 2, kind: input, shape index: {}]
  %s3 = inlined_call_operand.vmem [shape: f32[128,128], index: 3, kind: input, shape index: {}]
  %s4 = inlined_call_operand.vmem [shape: f32[1,128], index: 4, kind: input, shape index: {}]
  %s5 = inlined_call_operand.hbm [shape: f32[128,128], index: 5, kind: input, shape index: {}]
  %s6 = inlined_call_operand.hbm [shape: f32[1,128], index: 6, kind: input, shape index: {}]
  %s7 = inlined_call_operand.vmem [shape: f32[128,128], index: 7, kind: input, shape index: {}]
  %s8 = inlined_call_operand.vmem [shape: f32[1,128], index: 8, kind: input, shape index: {}]
  %s9 = inlined_call_operand.vmem [shape: f32[200,128], index: 9, kind: output, shape index: {}]
  %s10 = sld [smem:[#allocation0]]
  $region58: #{discriminator_forward.1} parent=0
    _
  %s12 = ssub.s32 1, %s10
  %s13 = scalar_select 0, %s12, %s10
  $region1: #{discriminator_forward.1} parent=0
    #allocation2 [shape = 'u8[8192]{0}', space=vmem, size = 0x2000, scoped, tag = 'input window, operand 1, single buffered']
    #allocation3 [shape = 's32[1]{0}', space=sflag, size = 0x4, scoped, tag = 'scoped memory for discriminator_forward.1']
    #allocation4 [shape = 'u8[65536]{0}', space=vmem, size = 0x10000, scoped, tag = 'input window, operand 5, single buffered']
    #allocation5 [shape = 's32[1]{0}', space=sflag, size = 0x4, scoped, tag = 'scoped memory for discriminator_forward.1']
    #allocation6 [shape = 'u8[512]{0}', space=vmem, size = 0x400, scoped, tag = 'input window, operand 6, single buffered']
    %14 = vsyncpa [#allocation3], 0
    %15 = vsyncpa [#allocation5], 0
    // Predicated region
    $region2: #{discriminator_forward.1} parent=1 // pred_check
      _
    $region3: #{discriminator_forward.1} parent=1 // pred_check_branch
      %17 = sbr.rel (0) target = $region5
    $region4: #{discriminator_forward.1} parent=1 // pred_region
      _
    $region5: #{discriminator_forward.1} parent=1 // pred_fallthru
      _
    // Predicated region
    $region6: #{discriminator_forward.1} parent=1 // pred_check
      _
    $region7: #{discriminator_forward.1} parent=1 // pred_check_branch
      %19 = sbr.rel (0) target = $region9
    $region8: #{discriminator_forward.1} parent=1 // pred_region
      %s21 = ssub.s32 256, 256
      %22 = vsyncadd [#allocation3], %s21
      %s23 = sshll.u32 [#allocation2], 4
      %s24 = int_to_ptr.vmem [resolvable:$true] %s23
      %29 = dma.hbm_to_vmem [thread:$0]  %s1, 256, %s24, [#allocation3], 128, 128, 8
    $region9: #{discriminator_forward.1} parent=1 // pred_fallthru
      _
    // Predicated region
    $region10: #{discriminator_forward.1} parent=1 // pred_check
      _
    $region11: #{discriminator_forward.1} parent=1 // pred_check_branch
      %31 = sbr.rel (0) target = $region13
    $region12: #{discriminator_forward.1} parent=1 // pred_region
      _
    $region13: #{discriminator_forward.1} parent=1 // pred_fallthru
      _
    // Predicated region
    $region14: #{discriminator_forward.1} parent=1 // pred_check
      _
    $region15: #{discriminator_forward.1} parent=1 // pred_check_branch
      %33 = sbr.rel (0) target = $region17
    $region16: #{discriminator_forward.1} parent=1 // pred_region
      _
    $region17: #{discriminator_forward.1} parent=1 // pred_fallthru
      _
    // Predicated region
    $region18: #{discriminator_forward.1} parent=1 // pred_check
      _
    $region19: #{discriminator_forward.1} parent=1 // pred_check_branch
      %35 = sbr.rel (0) target = $region21
    $region20: #{discriminator_forward.1} parent=1 // pred_region
      _
    $region21: #{discriminator_forward.1} parent=1 // pred_fallthru
      _
    // Predicated region
    $region22: #{discriminator_forward.1} parent=1 // pred_check
      _
    $region23: #{discriminator_forward.1} parent=1 // pred_check_branch
      %37 = sbr.rel (0) target = $region25
    $region24: #{discriminator_forward.1} parent=1 // pred_region
      %s39 = ssub.s32 2048, 2048
      %40 = vsyncadd [#allocation5], %s39
      %s41 = sshll.u32 [#allocation4], 4
      %s42 = int_to_ptr.vmem [resolvable:$true] %s41
      %47 = dma.hbm_to_vmem [thread:$0]  %s5, 2048, %s42, [#allocation5], 128, 128, 8
    $region25: #{discriminator_forward.1} parent=1 // pred_fallthru
      _
    // Predicated region
    $region26: #{discriminator_forward.1} parent=1 // pred_check
      _
    $region27: #{discriminator_forward.1} parent=1 // pred_check_branch
      %49 = sbr.rel (0) target = $region29
    $region28: #{discriminator_forward.1} parent=1 // pred_region
      %s51 = ssub.s32 16, 16
      %52 = vsyncadd [#allocation5], %s51
      %s54 = sshll.u32 [#allocation6], 4
      %s55 = int_to_ptr.vmem [resolvable:$true] %s54
      %57 = dma.hbm_to_vmem [thread:$0]  %s6, 16, %s55, [#allocation5]
    $region29: #{discriminator_forward.1} parent=1 // pred_fallthru
      _
    // Predicated region
    $region30: #{discriminator_forward.1} parent=1 // pred_check
      _
    $region31: #{discriminator_forward.1} parent=1 // pred_check_branch
      %59 = sbr.rel (0) target = $region33
    $region32: #{discriminator_forward.1} parent=1 // pred_region
      _
    $region33: #{discriminator_forward.1} parent=1 // pred_fallthru
      _
    // Predicated region
    $region34: #{discriminator_forward.1} parent=1 // pred_check
      _
    $region35: #{discriminator_forward.1} parent=1 // pred_check_branch
      %61 = sbr.rel (0) target = $region37
    $region36: #{discriminator_forward.1} parent=1 // pred_region
      _
    $region37: #{discriminator_forward.1} parent=1 // pred_fallthru
      _
    // Predicated region
    $region38: #{discriminator_forward.1} parent=1 // pred_check
      _
    $region39: #{discriminator_forward.1} parent=1 // pred_check_branch
      %63 = sbr.rel (0) target = $region41
    $region40: #{discriminator_forward.1} parent=1 // pred_region
      %64 = dma.done [#allocation3], 256
    $region41: #{discriminator_forward.1} parent=1 // pred_fallthru
      _
    // Predicated region
    $region42: #{discriminator_forward.1} parent=1 // pred_check
      _
    $region43: #{discriminator_forward.1} parent=1 // pred_check_branch
      %66 = sbr.rel (0) target = $region45
    $region44: #{discriminator_forward.1} parent=1 // pred_region
      %67 = dma.done [#allocation5], 2048
    $region45: #{discriminator_forward.1} parent=1 // pred_fallthru
      _
    // Predicated region
    $region46: #{discriminator_forward.1} parent=1 // pred_check
      _
    $region47: #{discriminator_forward.1} parent=1 // pred_check_branch
      %69 = sbr.rel (0) target = $region49
    $region48: #{discriminator_forward.1} parent=1 // pred_region
      %70 = dma.done [#allocation5], 16
    $region49: #{discriminator_forward.1} parent=1 // pred_fallthru
      _
    %v71 = vld [vmem:[%s0] sm:$0xff]
    %v72 = vld [vmem:[%s0 + $0x8] sm:$0xff]
    %v73 = vld [vmem:[%s0 + $0x10] sm:$0xff]
    %v74 = vld [vmem:[%s0 + $0x18] sm:$0xff]
    %v75 = vld [vmem:[%s0 + $0x20] sm:$0xff]
    %v76 = vld [vmem:[%s0 + $0x28] sm:$0xff]
    %v77 = vld [vmem:[%s0 + $0x30] sm:$0xff]
    %v78 = vld [vmem:[%s0 + $0x38] sm:$0xff]
    %v79 = vld [vmem:[%s0 + $0x40] sm:$0xff]
    %v80 = vld [vmem:[%s0 + $0x48] sm:$0xff]
    %v81 = vld [vmem:[%s0 + $0x50] sm:$0xff]
    %v82 = vld [vmem:[%s0 + $0x58] sm:$0xff]
    %v83 = vld [vmem:[%s0 + $0x60] sm:$0xff]
    %v84 = vld [vmem:[%s0 + $0x68] sm:$0xff]
    %v85 = vld [vmem:[%s0 + $0x70] sm:$0xff]
    %v86 = vld [vmem:[%s0 + $0x78] sm:$0xff]
    %v87 = vld [vmem:[%s0 + $0x80] sm:$0xff]
    %v88 = vld [vmem:[%s0 + $0x88] sm:$0xff]
    %v89 = vld [vmem:[%s0 + $0x90] sm:$0xff]
    %v90 = vld [vmem:[%s0 + $0x98] sm:$0xff]
    %v91 = vld [vmem:[%s0 + $0xa0] sm:$0xff]
    %v92 = vld [vmem:[%s0 + $0xa8] sm:$0xff]
    %v93 = vld [vmem:[%s0 + $0xb0] sm:$0xff]
    %v94 = vld [vmem:[%s0 + $0xb8] sm:$0xff]
    %v95 = vld [vmem:[%s0 + $0xc0] sm:$0xff]
    %v96 = vld [vmem:[#allocation2] sm:$0xff]
    %v97 = vld [vmem:[#allocation2 + $0x8] sm:$0xf]
    %v98 = vld [vmem:[%s2] sm:$0x1]
    %v100 = vlaneseq
    %v101 = vshrl.u32 %v100, 7
    %v102 = vsub.s32 0, %v101
    %v103 = vrot.slane %v98, %v102
    %vm105 = vcmask 97280
    %v107 = vsel %vm105, %v71, 0
    %v110 = vsel %vm105, %v72, 0
    %v113 = vsel %vm105, %v73, 0
    %v116 = vsel %vm105, %v74, 0
    %v119 = vsel %vm105, %v75, 0
    %v122 = vsel %vm105, %v76, 0
    %v125 = vsel %vm105, %v77, 0
    %v128 = vsel %vm105, %v78, 0
    %v131 = vsel %vm105, %v79, 0
    %v134 = vsel %vm105, %v80, 0
    %v137 = vsel %vm105, %v81, 0
    %v140 = vsel %vm105, %v82, 0
    %v143 = vsel %vm105, %v83, 0
    %v146 = vsel %vm105, %v84, 0
    %v149 = vsel %vm105, %v85, 0
    %v152 = vsel %vm105, %v86, 0
    %v155 = vsel %vm105, %v87, 0
    %v158 = vsel %vm105, %v88, 0
    %v161 = vsel %vm105, %v89, 0
    %v164 = vsel %vm105, %v90, 0
    %v167 = vsel %vm105, %v91, 0
    %v170 = vsel %vm105, %v92, 0
    %v173 = vsel %vm105, %v93, 0
    %v176 = vsel %vm105, %v94, 0
    %v179 = vsel %vm105, %v95, 0
    %vm181 = vcmask 1043456
    %v183 = vsel %vm181, %v97, 0
    %185 = vmatprep.subr.mxu0 0.0
    %186 = vmatpush1.msra.mxu0 %v96
    %187 = vmatprep.subr.mxu0 0.0
    %188 = vmatpush1.msra.mxu0 %v183
    %189 = vmatprep.subr.mxu0 0.0
    %190 = vmatpush1.msra.mxu0 0.0
    %191 = vmatprep.subr.mxu0 0.0
    %192 = vmatpush1.msra.mxu0 0.0
    %193 = vmatprep.subr.mxu0 0.0
    %194 = vmatpush1.msra.mxu0 0.0
    %195 = vmatprep.subr.mxu0 0.0
    %196 = vmatpush1.msra.mxu0 0.0
    %197 = vmatprep.subr.mxu0 0.0
    %198 = vmatpush1.msra.mxu0 0.0
    %199 = vmatprep.subr.mxu0 0.0
    %200 = vmatpush1.msra.mxu0 0.0
    %201 = vmatprep.subr.mxu0 0.0
    %202 = vmatpush1.msra.mxu0 0.0
    %203 = vmatprep.subr.mxu0 0.0
    %204 = vmatpush1.msra.mxu0 0.0
    %205 = vmatprep.subr.mxu0 0.0
    %206 = vmatpush1.msra.mxu0 0.0
    %207 = vmatprep.subr.mxu0 0.0
    %208 = vmatpush1.msra.mxu0 0.0
    %209 = vmatprep.subr.mxu0 0.0
    %210 = vmatpush1.msra.mxu0 0.0
    %211 = vmatprep.subr.mxu0 0.0
    %212 = vmatpush1.msra.mxu0 0.0
    %213 = vmatprep.subr.mxu0 0.0
    %214 = vmatpush1.msra.mxu0 0.0
    %215 = vmatprep.subr.mxu0 0.0
    %216 = vmatpush1.msra.mxu0 0.0
    %217 = vmatprep.subr.mxu0 0.0
    %218 = vmatpush1.msra.mxu0 0.0
    %219 = vmatprep.subr.mxu0 0.0
    %220 = vmatpush1.msra.mxu0 0.0
    %221 = vmatprep.subr.mxu0 0.0
    %222 = vmatpush1.msra.mxu0 0.0
    %223 = vmatprep.subr.mxu0 0.0
    %224 = vmatpush1.msra.mxu0 0.0
    %225 = vmatprep.subr.mxu0 0.0
    %226 = vmatpush1.msra.mxu0 0.0
    %227 = vmatprep.subr.mxu0 0.0
    %228 = vmatpush1.msra.mxu0 0.0
    %229 = vmatprep.subr.mxu0 0.0
    %230 = vmatpush1.msra.mxu0 0.0
    %231 = vmatprep.subr.mxu0 0.0
    %232 = vmatpush1.msra.mxu0 0.0
    %233 = vmatprep.subr.mxu0 0.0
    %234 = vmatpush1.msra.mxu0 0.0
    %235 = vmatprep.subr.mxu0 0.0
    %236 = vmatpush1.msra.mxu0 0.0
    %237 = vmatprep.subr.mxu0 0.0
    %238 = vmatpush1.msra.mxu0 0.0
    %239 = vmatprep.subr.mxu0 0.0
    %240 = vmatpush1.msra.mxu0 0.0
    %241 = vmatprep.subr.mxu0 0.0
    %242 = vmatpush1.msra.mxu0 0.0
    %243 = vmatprep.subr.mxu0 0.0
    %244 = vmatpush1.msra.mxu0 0.0
    %245 = vmatprep.subr.mxu0 0.0
    %246 = vmatpush1.msra.mxu0 0.0
    %247 = vmatprep.subr.mxu0 0.0
    %248 = vmatpush1.msra.mxu0 0.0
    %249 = vmatprep.mubr.f32.mxu0 0.0
    %250 = vmatmul.mubr.f32.gmra.mrb[0].mxu0 %v107
    %v251 = vpop.f32.mrb[0].mxu0
    %v252 = vadd.f32 %v103, %v251
    %v253 = vpop.f32.mrb[0].mxu0
    %254 = vmatprep.mubr.f32.mxu0 0.0
    %255 = vmatmul.mubr.f32.gmra.mrb[0].mxu0 %v110
    %v256 = vpop.f32.mrb[0].mxu0
    %v257 = vadd.f32 %v103, %v256
    %v258 = vpop.f32.mrb[0].mxu0
    %259 = vmatprep.mubr.f32.mxu0 0.0
    %260 = vmatmul.mubr.f32.gmra.mrb[0].mxu0 %v113
    %v261 = vpop.f32.mrb[0].mxu0
    %v262 = vadd.f32 %v103, %v261
    %v263 = vpop.f32.mrb[0].mxu0
    %264 = vmatprep.mubr.f32.mxu0 0.0
    %265 = vmatmul.mubr.f32.gmra.mrb[0].mxu0 %v116
    %v266 = vpop.f32.mrb[0].mxu0
    %v267 = vadd.f32 %v103, %v266
    %v268 = vpop.f32.mrb[0].mxu0
    %269 = vmatprep.mubr.f32.mxu0 0.0
    %270 = vmatmul.mubr.f32.gmra.mrb[0].mxu0 %v119
    %v271 = vpop.f32.mrb[0].mxu0
    %v272 = vadd.f32 %v103, %v271
    %v273 = vpop.f32.mrb[0].mxu0
    %274 = vmatprep.mubr.f32.mxu0 0.0
    %275 = vmatmul.mubr.f32.gmra.mrb[0].mxu0 %v122
    %v276 = vpop.f32.mrb[0].mxu0
    %v277 = vadd.f32 %v103, %v276
    %v278 = vpop.f32.mrb[0].mxu0
    %279 = vmatprep.mubr.f32.mxu0 0.0
    %280 = vmatmul.mubr.f32.gmra.mrb[0].mxu0 %v125
    %v281 = vpop.f32.mrb[0].mxu0
    %v282 = vadd.f32 %v103, %v281
    %v283 = vpop.f32.mrb[0].mxu0
    %284 = vmatprep.mubr.f32.mxu0 0.0
    %285 = vmatmul.mubr.f32.gmra.mrb[0].mxu0 %v128
    %v286 = vpop.f32.mrb[0].mxu0
    %v287 = vadd.f32 %v103, %v286
    %v288 = vpop.f32.mrb[0].mxu0
    %289 = vmatprep.mubr.f32.mxu0 0.0
    %290 = vmatmul.mubr.f32.gmra.mrb[0].mxu0 %v131
    %v291 = vpop.f32.mrb[0].mxu0
    %v292 = vadd.f32 %v103, %v291
    %v293 = vpop.f32.mrb[0].mxu0
    %294 = vmatprep.mubr.f32.mxu0 0.0
    %295 = vmatmul.mubr.f32.gmra.mrb[0].mxu0 %v134
    %v296 = vpop.f32.mrb[0].mxu0
    %v297 = vadd.f32 %v103, %v296
    %v298 = vpop.f32.mrb[0].mxu0
    %299 = vmatprep.mubr.f32.mxu0 0.0
    %300 = vmatmul.mubr.f32.gmra.mrb[0].mxu0 %v137
    %v301 = vpop.f32.mrb[0].mxu0
    %v302 = vadd.f32 %v103, %v301
    %v303 = vpop.f32.mrb[0].mxu0
    %304 = vmatprep.mubr.f32.mxu0 0.0
    %305 = vmatmul.mubr.f32.gmra.mrb[0].mxu0 %v140
    %v306 = vpop.f32.mrb[0].mxu0
    %v307 = vadd.f32 %v103, %v306
    %v308 = vpop.f32.mrb[0].mxu0
    %309 = vmatprep.mubr.f32.mxu0 0.0
    %310 = vmatmul.mubr.f32.gmra.mrb[0].mxu0 %v143
    %v311 = vpop.f32.mrb[0].mxu0
    %v312 = vadd.f32 %v103, %v311
    %v313 = vpop.f32.mrb[0].mxu0
    %314 = vmatprep.mubr.f32.mxu0 0.0
    %315 = vmatmul.mubr.f32.gmra.mrb[0].mxu0 %v146
    %v316 = vpop.f32.mrb[0].mxu0
    %v317 = vadd.f32 %v103, %v316
    %v318 = vpop.f32.mrb[0].mxu0
    %319 = vmatprep.mubr.f32.mxu0 0.0
    %320 = vmatmul.mubr.f32.gmra.mrb[0].mxu0 %v149
    %v321 = vpop.f32.mrb[0].mxu0
    %v322 = vadd.f32 %v103, %v321
    %v323 = vpop.f32.mrb[0].mxu0
    %324 = vmatprep.mubr.f32.mxu0 0.0
    %325 = vmatmul.mubr.f32.gmra.mrb[0].mxu0 %v152
    %v326 = vpop.f32.mrb[0].mxu0
    %v327 = vadd.f32 %v103, %v326
    %v328 = vpop.f32.mrb[0].mxu0
    %329 = vmatprep.mubr.f32.mxu0 0.0
    %330 = vmatmul.mubr.f32.gmra.mrb[0].mxu0 %v155
    %v331 = vpop.f32.mrb[0].mxu0
    %v332 = vadd.f32 %v103, %v331
    %v333 = vpop.f32.mrb[0].mxu0
    %334 = vmatprep.mubr.f32.mxu0 0.0
    %335 = vmatmul.mubr.f32.gmra.mrb[0].mxu0 %v158
    %v336 = vpop.f32.mrb[0].mxu0
    %v337 = vadd.f32 %v103, %v336
    %v338 = vpop.f32.mrb[0].mxu0
    %339 = vmatprep.mubr.f32.mxu0 0.0
    %340 = vmatmul.mubr.f32.gmra.mrb[0].mxu0 %v161
    %v341 = vpop.f32.mrb[0].mxu0
    %v342 = vadd.f32 %v103, %v341
    %v343 = vpop.f32.mrb[0].mxu0
    %344 = vmatprep.mubr.f32.mxu0 0.0
    %345 = vmatmul.mubr.f32.gmra.mrb[0].mxu0 %v164
    %v346 = vpop.f32.mrb[0].mxu0
    %v347 = vadd.f32 %v103, %v346
    %v348 = vpop.f32.mrb[0].mxu0
    %349 = vmatprep.mubr.f32.mxu0 0.0
    %350 = vmatmul.mubr.f32.gmra.mrb[0].mxu0 %v167
    %v351 = vpop.f32.mrb[0].mxu0
    %v352 = vadd.f32 %v103, %v351
    %v353 = vpop.f32.mrb[0].mxu0
    %354 = vmatprep.mubr.f32.mxu0 0.0
    %355 = vmatmul.mubr.f32.gmra.mrb[0].mxu0 %v170
    %v356 = vpop.f32.mrb[0].mxu0
    %v357 = vadd.f32 %v103, %v356
    %v358 = vpop.f32.mrb[0].mxu0
    %359 = vmatprep.mubr.f32.mxu0 0.0
    %360 = vmatmul.mubr.f32.gmra.mrb[0].mxu0 %v173
    %v361 = vpop.f32.mrb[0].mxu0
    %v362 = vadd.f32 %v103, %v361
    %v363 = vpop.f32.mrb[0].mxu0
    %364 = vmatprep.mubr.f32.mxu0 0.0
    %365 = vmatmul.mubr.f32.gmra.mrb[0].mxu0 %v176
    %v366 = vpop.f32.mrb[0].mxu0
    %v367 = vadd.f32 %v103, %v366
    %v368 = vpop.f32.mrb[0].mxu0
    %369 = vmatprep.mubr.f32.mxu0 0.0
    %370 = vmatmul.mubr.f32.gmra.mrb[0].mxu0 %v179
    %v371 = vpop.f32.mrb[0].mxu0
    %v372 = vadd.f32 %v103, %v371
    %v373 = vpop.f32.mrb[0].mxu0
    %374 = vdwg.mxu0
    %v375 = vmax.f32 %v252, 0.0
    %v376 = vmax.f32 %v257, 0.0
    %v377 = vmax.f32 %v262, 0.0
    %v378 = vmax.f32 %v267, 0.0
    %v379 = vmax.f32 %v272, 0.0
    %v380 = vmax.f32 %v277, 0.0
    %v381 = vmax.f32 %v282, 0.0
    %v382 = vmax.f32 %v287, 0.0
    %v383 = vmax.f32 %v292, 0.0
    %v384 = vmax.f32 %v297, 0.0
    %v385 = vmax.f32 %v302, 0.0
    %v386 = vmax.f32 %v307, 0.0
    %v387 = vmax.f32 %v312, 0.0
    %v388 = vmax.f32 %v317, 0.0
    %v389 = vmax.f32 %v322, 0.0
    %v390 = vmax.f32 %v327, 0.0
    %v391 = vmax.f32 %v332, 0.0
    %v392 = vmax.f32 %v337, 0.0
    %v393 = vmax.f32 %v342, 0.0
    %v394 = vmax.f32 %v347, 0.0
    %v395 = vmax.f32 %v352, 0.0
    %v396 = vmax.f32 %v357, 0.0
    %v397 = vmax.f32 %v362, 0.0
    %v398 = vmax.f32 %v367, 0.0
    %v399 = vmax.f32 %v372, 0.0
    %v400 = vld [vmem:[%s3] sm:$0xff]
    %v401 = vld [vmem:[%s3 + $0x8] sm:$0xff]
    %v402 = vld [vmem:[%s3 + $0x10] sm:$0xff]
    %v403 = vld [vmem:[%s3 + $0x18] sm:$0xff]
    %v404 = vld [vmem:[%s3 + $0x20] sm:$0xff]
    %v405 = vld [vmem:[%s3 + $0x28] sm:$0xff]
    %v406 = vld [vmem:[%s3 + $0x30] sm:$0xff]
    %v407 = vld [vmem:[%s3 + $0x38] sm:$0xff]
    %v408 = vld [vmem:[%s3 + $0x40] sm:$0xff]
    %v409 = vld [vmem:[%s3 + $0x48] sm:$0xff]
    %v410 = vld [vmem:[%s3 + $0x50] sm:$0xff]
    %v411 = vld [vmem:[%s3 + $0x58] sm:$0xff]
    %v412 = vld [vmem:[%s3 + $0x60] sm:$0xff]
    %v413 = vld [vmem:[%s3 + $0x68] sm:$0xff]
    %v414 = vld [vmem:[%s3 + $0x70] sm:$0xff]
    %v415 = vld [vmem:[%s3 + $0x78] sm:$0xff]
    %v416 = vld [vmem:[%s4] sm:$0x1]
    %v418 = vlaneseq
    %v419 = vshrl.u32 %v418, 7
    %v420 = vsub.s32 0, %v419
    %v421 = vrot.slane %v416, %v420
    %423 = vmatprep.subr.mxu0 0.0
    %424 = vmatpush1.msra.mxu0 %v400
    %425 = vmatprep.subr.mxu0 0.0
    %426 = vmatpush1.msra.mxu0 %v401
    %427 = vmatprep.subr.mxu0 0.0
    %428 = vmatpush1.msra.mxu0 %v402
    %429 = vmatprep.subr.mxu0 0.0
    %430 = vmatpush1.msra.mxu0 %v403
    %431 = vmatprep.subr.mxu0 0.0
    %432 = vmatpush1.msra.mxu0 %v404
    %433 = vmatprep.subr.mxu0 0.0
    %434 = vmatpush1.msra.mxu0 %v405
    %435 = vmatprep.subr.mxu0 0.0
    %436 = vmatpush1.msra.mxu0 %v406
    %437 = vmatprep.subr.mxu0 0.0
    %438 = vmatpush1.msra.mxu0 %v407
    %439 = vmatprep.subr.mxu0 0.0
    %440 = vmatpush1.msra.mxu0 %v408
    %441 = vmatprep.subr.mxu0 0.0
    %442 = vmatpush1.msra.mxu0 %v409
    %443 = vmatprep.subr.mxu0 0.0
    %444 = vmatpush1.msra.mxu0 %v410
    %445 = vmatprep.subr.mxu0 0.0
    %446 = vmatpush1.msra.mxu0 %v411
    %447 = vmatprep.subr.mxu0 0.0
    %448 = vmatpush1.msra.mxu0 %v412
    %449 = vmatprep.subr.mxu0 0.0
    %450 = vmatpush1.msra.mxu0 %v413
    %451 = vmatprep.subr.mxu0 0.0
    %452 = vmatpush1.msra.mxu0 %v414
    %453 = vmatprep.subr.mxu0 0.0
    %454 = vmatpush1.msra.mxu0 %v415
    %455 = vmatprep.subr.mxu0 0.0
    %456 = vmatpush1.msra.mxu0 0.0
    %457 = vmatprep.subr.mxu0 0.0
    %458 = vmatpush1.msra.mxu0 0.0
    %459 = vmatprep.subr.mxu0 0.0
    %460 = vmatpush1.msra.mxu0 0.0
    %461 = vmatprep.subr.mxu0 0.0
    %462 = vmatpush1.msra.mxu0 0.0
    %463 = vmatprep.subr.mxu0 0.0
    %464 = vmatpush1.msra.mxu0 0.0
    %465 = vmatprep.subr.mxu0 0.0
    %466 = vmatpush1.msra.mxu0 0.0
    %467 = vmatprep.subr.mxu0 0.0
    %468 = vmatpush1.msra.mxu0 0.0
    %469 = vmatprep.subr.mxu0 0.0
    %470 = vmatpush1.msra.mxu0 0.0
    %471 = vmatprep.subr.mxu0 0.0
    %472 = vmatpush1.msra.mxu0 0.0
    %473 = vmatprep.subr.mxu0 0.0
    %474 = vmatpush1.msra.mxu0 0.0
    %475 = vmatprep.subr.mxu0 0.0
    %476 = vmatpush1.msra.mxu0 0.0
    %477 = vmatprep.subr.mxu0 0.0
    %478 = vmatpush1.msra.mxu0 0.0
    %479 = vmatprep.subr.mxu0 0.0
    %480 = vmatpush1.msra.mxu0 0.0
    %481 = vmatprep.subr.mxu0 0.0
    %482 = vmatpush1.msra.mxu0 0.0
    %483 = vmatprep.subr.mxu0 0.0
    %484 = vmatpush1.msra.mxu0 0.0
    %485 = vmatprep.subr.mxu0 0.0
    %486 = vmatpush1.msra.mxu0 0.0
    %487 = vmatprep.mubr.f32.mxu0 0.0
    %488 = vmatmul.mubr.f32.gmra.mrb[0].mxu0 %v375
    %v489 = vpop.f32.mrb[0].mxu0
    %v490 = vadd.f32 %v421, %v489
    %v491 = vpop.f32.mrb[0].mxu0
    %492 = vmatprep.mubr.f32.mxu0 0.0
    %493 = vmatmul.mubr.f32.gmra.mrb[0].mxu0 %v376
    %v494 = vpop.f32.mrb[0].mxu0
    %v495 = vadd.f32 %v421, %v494
    %v496 = vpop.f32.mrb[0].mxu0
    %497 = vmatprep.mubr.f32.mxu0 0.0
    %498 = vmatmul.mubr.f32.gmra.mrb[0].mxu0 %v377
    %v499 = vpop.f32.mrb[0].mxu0
    %v500 = vadd.f32 %v421, %v499
    %v501 = vpop.f32.mrb[0].mxu0
    %502 = vmatprep.mubr.f32.mxu0 0.0
    %503 = vmatmul.mubr.f32.gmra.mrb[0].mxu0 %v378
    %v504 = vpop.f32.mrb[0].mxu0
    %v505 = vadd.f32 %v421, %v504
    %v506 = vpop.f32.mrb[0].mxu0
    %507 = vmatprep.mubr.f32.mxu0 0.0
    %508 = vmatmul.mubr.f32.gmra.mrb[0].mxu0 %v379
    %v509 = vpop.f32.mrb[0].mxu0
    %v510 = vadd.f32 %v421, %v509
    %v511 = vpop.f32.mrb[0].mxu0
    %512 = vmatprep.mubr.f32.mxu0 0.0
    %513 = vmatmul.mubr.f32.gmra.mrb[0].mxu0 %v380
    %v514 = vpop.f32.mrb[0].mxu0
    %v515 = vadd.f32 %v421, %v514
    %v516 = vpop.f32.mrb[0].mxu0
    %517 = vmatprep.mubr.f32.mxu0 0.0
    %518 = vmatmul.mubr.f32.gmra.mrb[0].mxu0 %v381
    %v519 = vpop.f32.mrb[0].mxu0
    %v520 = vadd.f32 %v421, %v519
    %v521 = vpop.f32.mrb[0].mxu0
    %522 = vmatprep.mubr.f32.mxu0 0.0
    %523 = vmatmul.mubr.f32.gmra.mrb[0].mxu0 %v382
    %v524 = vpop.f32.mrb[0].mxu0
    %v525 = vadd.f32 %v421, %v524
    %v526 = vpop.f32.mrb[0].mxu0
    %527 = vmatprep.mubr.f32.mxu0 0.0
    %528 = vmatmul.mubr.f32.gmra.mrb[0].mxu0 %v383
    %v529 = vpop.f32.mrb[0].mxu0
    %v530 = vadd.f32 %v421, %v529
    %v531 = vpop.f32.mrb[0].mxu0
    %532 = vmatprep.mubr.f32.mxu0 0.0
    %533 = vmatmul.mubr.f32.gmra.mrb[0].mxu0 %v384
    %v534 = vpop.f32.mrb[0].mxu0
    %v535 = vadd.f32 %v421, %v534
    %v536 = vpop.f32.mrb[0].mxu0
    %537 = vmatprep.mubr.f32.mxu0 0.0
    %538 = vmatmul.mubr.f32.gmra.mrb[0].mxu0 %v385
    %v539 = vpop.f32.mrb[0].mxu0
    %v540 = vadd.f32 %v421, %v539
    %v541 = vpop.f32.mrb[0].mxu0
    %542 = vmatprep.mubr.f32.mxu0 0.0
    %543 = vmatmul.mubr.f32.gmra.mrb[0].mxu0 %v386
    %v544 = vpop.f32.mrb[0].mxu0
    %v545 = vadd.f32 %v421, %v544
    %v546 = vpop.f32.mrb[0].mxu0
    %547 = vmatprep.mubr.f32.mxu0 0.0
    %548 = vmatmul.mubr.f32.gmra.mrb[0].mxu0 %v387
    %v549 = vpop.f32.mrb[0].mxu0
    %v550 = vadd.f32 %v421, %v549
    %v551 = vpop.f32.mrb[0].mxu0
    %552 = vmatprep.mubr.f32.mxu0 0.0
    %553 = vmatmul.mubr.f32.gmra.mrb[0].mxu0 %v388
    %v554 = vpop.f32.mrb[0].mxu0
    %v555 = vadd.f32 %v421, %v554
    %v556 = vpop.f32.mrb[0].mxu0
    %557 = vmatprep.mubr.f32.mxu0 0.0
    %558 = vmatmul.mubr.f32.gmra.mrb[0].mxu0 %v389
    %v559 = vpop.f32.mrb[0].mxu0
    %v560 = vadd.f32 %v421, %v559
    %v561 = vpop.f32.mrb[0].mxu0
    %562 = vmatprep.mubr.f32.mxu0 0.0
    %563 = vmatmul.mubr.f32.gmra.mrb[0].mxu0 %v390
    %v564 = vpop.f32.mrb[0].mxu0
    %v565 = vadd.f32 %v421, %v564
    %v566 = vpop.f32.mrb[0].mxu0
    %567 = vmatprep.mubr.f32.mxu0 0.0
    %568 = vmatmul.mubr.f32.gmra.mrb[0].mxu0 %v391
    %v569 = vpop.f32.mrb[0].mxu0
    %v570 = vadd.f32 %v421, %v569
    %v571 = vpop.f32.mrb[0].mxu0
    %572 = vmatprep.mubr.f32.mxu0 0.0
    %573 = vmatmul.mubr.f32.gmra.mrb[0].mxu0 %v392
    %v574 = vpop.f32.mrb[0].mxu0
    %v575 = vadd.f32 %v421, %v574
    %v576 = vpop.f32.mrb[0].mxu0
    %577 = vmatprep.mubr.f32.mxu0 0.0
    %578 = vmatmul.mubr.f32.gmra.mrb[0].mxu0 %v393
    %v579 = vpop.f32.mrb[0].mxu0
    %v580 = vadd.f32 %v421, %v579
    %v581 = vpop.f32.mrb[0].mxu0
    %582 = vmatprep.mubr.f32.mxu0 0.0
    %583 = vmatmul.mubr.f32.gmra.mrb[0].mxu0 %v394
    %v584 = vpop.f32.mrb[0].mxu0
    %v585 = vadd.f32 %v421, %v584
    %v586 = vpop.f32.mrb[0].mxu0
    %587 = vmatprep.mubr.f32.mxu0 0.0
    %588 = vmatmul.mubr.f32.gmra.mrb[0].mxu0 %v395
    %v589 = vpop.f32.mrb[0].mxu0
    %v590 = vadd.f32 %v421, %v589
    %v591 = vpop.f32.mrb[0].mxu0
    %592 = vmatprep.mubr.f32.mxu0 0.0
    %593 = vmatmul.mubr.f32.gmra.mrb[0].mxu0 %v396
    %v594 = vpop.f32.mrb[0].mxu0
    %v595 = vadd.f32 %v421, %v594
    %v596 = vpop.f32.mrb[0].mxu0
    %597 = vmatprep.mubr.f32.mxu0 0.0
    %598 = vmatmul.mubr.f32.gmra.mrb[0].mxu0 %v397
    %v599 = vpop.f32.mrb[0].mxu0
    %v600 = vadd.f32 %v421, %v599
    %v601 = vpop.f32.mrb[0].mxu0
    %602 = vmatprep.mubr.f32.mxu0 0.0
    %603 = vmatmul.mubr.f32.gmra.mrb[0].mxu0 %v398
    %v604 = vpop.f32.mrb[0].mxu0
    %v605 = vadd.f32 %v421, %v604
    %v606 = vpop.f32.mrb[0].mxu0
    %607 = vmatprep.mubr.f32.mxu0 0.0
    %608 = vmatmul.mubr.f32.gmra.mrb[0].mxu0 %v399
    %v609 = vpop.f32.mrb[0].mxu0
    %v610 = vadd.f32 %v421, %v609
    %v611 = vpop.f32.mrb[0].mxu0
    %612 = vdwg.mxu0
    %v613 = vmax.f32 %v490, 0.0
    %v614 = vmax.f32 %v495, 0.0
    %v615 = vmax.f32 %v500, 0.0
    %v616 = vmax.f32 %v505, 0.0
    %v617 = vmax.f32 %v510, 0.0
    %v618 = vmax.f32 %v515, 0.0
    %v619 = vmax.f32 %v520, 0.0
    %v620 = vmax.f32 %v525, 0.0
    %v621 = vmax.f32 %v530, 0.0
    %v622 = vmax.f32 %v535, 0.0
    %v623 = vmax.f32 %v540, 0.0
    %v624 = vmax.f32 %v545, 0.0
    %v625 = vmax.f32 %v550, 0.0
    %v626 = vmax.f32 %v555, 0.0
    %v627 = vmax.f32 %v560, 0.0
    %v628 = vmax.f32 %v565, 0.0
    %v629 = vmax.f32 %v570, 0.0
    %v630 = vmax.f32 %v575, 0.0
    %v631 = vmax.f32 %v580, 0.0
    %v632 = vmax.f32 %v585, 0.0
    %v633 = vmax.f32 %v590, 0.0
    %v634 = vmax.f32 %v595, 0.0
    %v635 = vmax.f32 %v600, 0.0
    %v636 = vmax.f32 %v605, 0.0
    %v637 = vmax.f32 %v610, 0.0
    %v638 = vld [vmem:[#allocation4] sm:$0xff]
    %v639 = vld [vmem:[#allocation4 + $0x8] sm:$0xff]
    %v640 = vld [vmem:[#allocation4 + $0x10] sm:$0xff]
    %v641 = vld [vmem:[#allocation4 + $0x18] sm:$0xff]
    %v642 = vld [vmem:[#allocation4 + $0x20] sm:$0xff]
    %v643 = vld [vmem:[#allocation4 + $0x28] sm:$0xff]
    %v644 = vld [vmem:[#allocation4 + $0x30] sm:$0xff]
    %v645 = vld [vmem:[#allocation4 + $0x38] sm:$0xff]
    %v646 = vld [vmem:[#allocation4 + $0x40] sm:$0xff]
    %v647 = vld [vmem:[#allocation4 + $0x48] sm:$0xff]
    %v648 = vld [vmem:[#allocation4 + $0x50] sm:$0xff]
    %v649 = vld [vmem:[#allocation4 + $0x58] sm:$0xff]
    %v650 = vld [vmem:[#allocation4 + $0x60] sm:$0xff]
    %v651 = vld [vmem:[#allocation4 + $0x68] sm:$0xff]
    %v652 = vld [vmem:[#allocation4 + $0x70] sm:$0xff]
    %v653 = vld [vmem:[#allocation4 + $0x78] sm:$0xff]
    %v654 = vld [vmem:[#allocation6] sm:$0x1]
    %v656 = vlaneseq
    %v657 = vshrl.u32 %v656, 7
    %v658 = vsub.s32 0, %v657
    %v659 = vrot.slane %v654, %v658
    %661 = vmatprep.subr.mxu0 0.0
    %662 = vmatpush1.msra.mxu0 %v638
    %663 = vmatprep.subr.mxu0 0.0
    %664 = vmatpush1.msra.mxu0 %v639
    %665 = vmatprep.subr.mxu0 0.0
    %666 = vmatpush1.msra.mxu0 %v640
    %667 = vmatprep.subr.mxu0 0.0
    %668 = vmatpush1.msra.mxu0 %v641
    %669 = vmatprep.subr.mxu0 0.0
    %670 = vmatpush1.msra.mxu0 %v642
    %671 = vmatprep.subr.mxu0 0.0
    %672 = vmatpush1.msra.mxu0 %v643
    %673 = vmatprep.subr.mxu0 0.0
    %674 = vmatpush1.msra.mxu0 %v644
    %675 = vmatprep.subr.mxu0 0.0
    %676 = vmatpush1.msra.mxu0 %v645
    %677 = vmatprep.subr.mxu0 0.0
    %678 = vmatpush1.msra.mxu0 %v646
    %679 = vmatprep.subr.mxu0 0.0
    %680 = vmatpush1.msra.mxu0 %v647
    %681 = vmatprep.subr.mxu0 0.0
    %682 = vmatpush1.msra.mxu0 %v648
    %683 = vmatprep.subr.mxu0 0.0
    %684 = vmatpush1.msra.mxu0 %v649
    %685 = vmatprep.subr.mxu0 0.0
    %686 = vmatpush1.msra.mxu0 %v650
    %687 = vmatprep.subr.mxu0 0.0
    %688 = vmatpush1.msra.mxu0 %v651
    %689 = vmatprep.subr.mxu0 0.0
    %690 = vmatpush1.msra.mxu0 %v652
    %691 = vmatprep.subr.mxu0 0.0
    %692 = vmatpush1.msra.mxu0 %v653
    %693 = vmatprep.subr.mxu0 0.0
    %694 = vmatpush1.msra.mxu0 0.0
    %695 = vmatprep.subr.mxu0 0.0
    %696 = vmatpush1.msra.mxu0 0.0
    %697 = vmatprep.subr.mxu0 0.0
    %698 = vmatpush1.msra.mxu0 0.0
    %699 = vmatprep.subr.mxu0 0.0
    %700 = vmatpush1.msra.mxu0 0.0
    %701 = vmatprep.subr.mxu0 0.0
    %702 = vmatpush1.msra.mxu0 0.0
    %703 = vmatprep.subr.mxu0 0.0
    %704 = vmatpush1.msra.mxu0 0.0
    %705 = vmatprep.subr.mxu0 0.0
    %706 = vmatpush1.msra.mxu0 0.0
    %707 = vmatprep.subr.mxu0 0.0
    %708 = vmatpush1.msra.mxu0 0.0
    %709 = vmatprep.subr.mxu0 0.0
    %710 = vmatpush1.msra.mxu0 0.0
    %711 = vmatprep.subr.mxu0 0.0
    %712 = vmatpush1.msra.mxu0 0.0
    %713 = vmatprep.subr.mxu0 0.0
    %714 = vmatpush1.msra.mxu0 0.0
    %715 = vmatprep.subr.mxu0 0.0
    %716 = vmatpush1.msra.mxu0 0.0
    %717 = vmatprep.subr.mxu0 0.0
    %718 = vmatpush1.msra.mxu0 0.0
    %719 = vmatprep.subr.mxu0 0.0
    %720 = vmatpush1.msra.mxu0 0.0
    %721 = vmatprep.subr.mxu0 0.0
    %722 = vmatpush1.msra.mxu0 0.0
    %723 = vmatprep.subr.mxu0 0.0
    %724 = vmatpush1.msra.mxu0 0.0
    %725 = vmatprep.mubr.f32.mxu0 0.0
    %726 = vmatmul.mubr.f32.gmra.mrb[0].mxu0 %v613
    %v727 = vpop.f32.mrb[0].mxu0
    %v728 = vadd.f32 %v659, %v727
    %v729 = vpop.f32.mrb[0].mxu0
    %730 = vmatprep.mubr.f32.mxu0 0.0
    %731 = vmatmul.mubr.f32.gmra.mrb[0].mxu0 %v614
    %v732 = vpop.f32.mrb[0].mxu0
    %v733 = vadd.f32 %v659, %v732
    %v734 = vpop.f32.mrb[0].mxu0
    %735 = vmatprep.mubr.f32.mxu0 0.0
    %736 = vmatmul.mubr.f32.gmra.mrb[0].mxu0 %v615
    %v737 = vpop.f32.mrb[0].mxu0
    %v738 = vadd.f32 %v659, %v737
    %v739 = vpop.f32.mrb[0].mxu0
    %740 = vmatprep.mubr.f32.mxu0 0.0
    %741 = vmatmul.mubr.f32.gmra.mrb[0].mxu0 %v616
    %v742 = vpop.f32.mrb[0].mxu0
    %v743 = vadd.f32 %v659, %v742
    %v744 = vpop.f32.mrb[0].mxu0
    %745 = vmatprep.mubr.f32.mxu0 0.0
    %746 = vmatmul.mubr.f32.gmra.mrb[0].mxu0 %v617
    %v747 = vpop.f32.mrb[0].mxu0
    %v748 = vadd.f32 %v659, %v747
    %v749 = vpop.f32.mrb[0].mxu0
    %750 = vmatprep.mubr.f32.mxu0 0.0
    %751 = vmatmul.mubr.f32.gmra.mrb[0].mxu0 %v618
    %v752 = vpop.f32.mrb[0].mxu0
    %v753 = vadd.f32 %v659, %v752
    %v754 = vpop.f32.mrb[0].mxu0
    %755 = vmatprep.mubr.f32.mxu0 0.0
    %756 = vmatmul.mubr.f32.gmra.mrb[0].mxu0 %v619
    %v757 = vpop.f32.mrb[0].mxu0
    %v758 = vadd.f32 %v659, %v757
    %v759 = vpop.f32.mrb[0].mxu0
    %760 = vmatprep.mubr.f32.mxu0 0.0
    %761 = vmatmul.mubr.f32.gmra.mrb[0].mxu0 %v620
    %v762 = vpop.f32.mrb[0].mxu0
    %v763 = vadd.f32 %v659, %v762
    %v764 = vpop.f32.mrb[0].mxu0
    %765 = vmatprep.mubr.f32.mxu0 0.0
    %766 = vmatmul.mubr.f32.gmra.mrb[0].mxu0 %v621
    %v767 = vpop.f32.mrb[0].mxu0
    %v768 = vadd.f32 %v659, %v767
    %v769 = vpop.f32.mrb[0].mxu0
    %770 = vmatprep.mubr.f32.mxu0 0.0
    %771 = vmatmul.mubr.f32.gmra.mrb[0].mxu0 %v622
    %v772 = vpop.f32.mrb[0].mxu0
    %v773 = vadd.f32 %v659, %v772
    %v774 = vpop.f32.mrb[0].mxu0
    %775 = vmatprep.mubr.f32.mxu0 0.0
    %776 = vmatmul.mubr.f32.gmra.mrb[0].mxu0 %v623
    %v777 = vpop.f32.mrb[0].mxu0
    %v778 = vadd.f32 %v659, %v777
    %v779 = vpop.f32.mrb[0].mxu0
    %780 = vmatprep.mubr.f32.mxu0 0.0
    %781 = vmatmul.mubr.f32.gmra.mrb[0].mxu0 %v624
    %v782 = vpop.f32.mrb[0].mxu0
    %v783 = vadd.f32 %v659, %v782
    %v784 = vpop.f32.mrb[0].mxu0
    %785 = vmatprep.mubr.f32.mxu0 0.0
    %786 = vmatmul.mubr.f32.gmra.mrb[0].mxu0 %v625
    %v787 = vpop.f32.mrb[0].mxu0
    %v788 = vadd.f32 %v659, %v787
    %v789 = vpop.f32.mrb[0].mxu0
    %790 = vmatprep.mubr.f32.mxu0 0.0
    %791 = vmatmul.mubr.f32.gmra.mrb[0].mxu0 %v626
    %v792 = vpop.f32.mrb[0].mxu0
    %v793 = vadd.f32 %v659, %v792
    %v794 = vpop.f32.mrb[0].mxu0
    %795 = vmatprep.mubr.f32.mxu0 0.0
    %796 = vmatmul.mubr.f32.gmra.mrb[0].mxu0 %v627
    %v797 = vpop.f32.mrb[0].mxu0
    %v798 = vadd.f32 %v659, %v797
    %v799 = vpop.f32.mrb[0].mxu0
    %800 = vmatprep.mubr.f32.mxu0 0.0
    %801 = vmatmul.mubr.f32.gmra.mrb[0].mxu0 %v628
    %v802 = vpop.f32.mrb[0].mxu0
    %v803 = vadd.f32 %v659, %v802
    %v804 = vpop.f32.mrb[0].mxu0
    %805 = vmatprep.mubr.f32.mxu0 0.0
    %806 = vmatmul.mubr.f32.gmra.mrb[0].mxu0 %v629
    %v807 = vpop.f32.mrb[0].mxu0
    %v808 = vadd.f32 %v659, %v807
    %v809 = vpop.f32.mrb[0].mxu0
    %810 = vmatprep.mubr.f32.mxu0 0.0
    %811 = vmatmul.mubr.f32.gmra.mrb[0].mxu0 %v630
    %v812 = vpop.f32.mrb[0].mxu0
    %v813 = vadd.f32 %v659, %v812
    %v814 = vpop.f32.mrb[0].mxu0
    %815 = vmatprep.mubr.f32.mxu0 0.0
    %816 = vmatmul.mubr.f32.gmra.mrb[0].mxu0 %v631
    %v817 = vpop.f32.mrb[0].mxu0
    %v818 = vadd.f32 %v659, %v817
    %v819 = vpop.f32.mrb[0].mxu0
    %820 = vmatprep.mubr.f32.mxu0 0.0
    %821 = vmatmul.mubr.f32.gmra.mrb[0].mxu0 %v632
    %v822 = vpop.f32.mrb[0].mxu0
    %v823 = vadd.f32 %v659, %v822
    %v824 = vpop.f32.mrb[0].mxu0
    %825 = vmatprep.mubr.f32.mxu0 0.0
    %826 = vmatmul.mubr.f32.gmra.mrb[0].mxu0 %v633
    %v827 = vpop.f32.mrb[0].mxu0
    %v828 = vadd.f32 %v659, %v827
    %v829 = vpop.f32.mrb[0].mxu0
    %830 = vmatprep.mubr.f32.mxu0 0.0
    %831 = vmatmul.mubr.f32.gmra.mrb[0].mxu0 %v634
    %v832 = vpop.f32.mrb[0].mxu0
    %v833 = vadd.f32 %v659, %v832
    %v834 = vpop.f32.mrb[0].mxu0
    %835 = vmatprep.mubr.f32.mxu0 0.0
    %836 = vmatmul.mubr.f32.gmra.mrb[0].mxu0 %v635
    %v837 = vpop.f32.mrb[0].mxu0
    %v838 = vadd.f32 %v659, %v837
    %v839 = vpop.f32.mrb[0].mxu0
    %840 = vmatprep.mubr.f32.mxu0 0.0
    %841 = vmatmul.mubr.f32.gmra.mrb[0].mxu0 %v636
    %v842 = vpop.f32.mrb[0].mxu0
    %v843 = vadd.f32 %v659, %v842
    %v844 = vpop.f32.mrb[0].mxu0
    %845 = vmatprep.mubr.f32.mxu0 0.0
    %846 = vmatmul.mubr.f32.gmra.mrb[0].mxu0 %v637
    %v847 = vpop.f32.mrb[0].mxu0
    %v848 = vadd.f32 %v659, %v847
    %v849 = vpop.f32.mrb[0].mxu0
    %850 = vdwg.mxu0
    %v851 = vmax.f32 %v728, 0.0
    %v852 = vmax.f32 %v733, 0.0
    %v853 = vmax.f32 %v738, 0.0
    %v854 = vmax.f32 %v743, 0.0
    %v855 = vmax.f32 %v748, 0.0
    %v856 = vmax.f32 %v753, 0.0
    %v857 = vmax.f32 %v758, 0.0
    %v858 = vmax.f32 %v763, 0.0
    %v859 = vmax.f32 %v768, 0.0
    %v860 = vmax.f32 %v773, 0.0
    %v861 = vmax.f32 %v778, 0.0
    %v862 = vmax.f32 %v783, 0.0
    %v863 = vmax.f32 %v788, 0.0
    %v864 = vmax.f32 %v793, 0.0
    %v865 = vmax.f32 %v798, 0.0
    %v866 = vmax.f32 %v803, 0.0
    %v867 = vmax.f32 %v808, 0.0
    %v868 = vmax.f32 %v813, 0.0
    %v869 = vmax.f32 %v818, 0.0
    %v870 = vmax.f32 %v823, 0.0
    %v871 = vmax.f32 %v828, 0.0
    %v872 = vmax.f32 %v833, 0.0
    %v873 = vmax.f32 %v838, 0.0
    %v874 = vmax.f32 %v843, 0.0
    %v875 = vmax.f32 %v848, 0.0
    %v876 = vld [vmem:[%s7] sm:$0xff]
    %v877 = vld [vmem:[%s7 + $0x8] sm:$0xff]
    %v878 = vld [vmem:[%s7 + $0x10] sm:$0xff]
    %v879 = vld [vmem:[%s7 + $0x18] sm:$0xff]
    %v880 = vld [vmem:[%s7 + $0x20] sm:$0xff]
    %v881 = vld [vmem:[%s7 + $0x28] sm:$0xff]
    %v882 = vld [vmem:[%s7 + $0x30] sm:$0xff]
    %v883 = vld [vmem:[%s7 + $0x38] sm:$0xff]
    %v884 = vld [vmem:[%s7 + $0x40] sm:$0xff]
    %v885 = vld [vmem:[%s7 + $0x48] sm:$0xff]
    %v886 = vld [vmem:[%s7 + $0x50] sm:$0xff]
    %v887 = vld [vmem:[%s7 + $0x58] sm:$0xff]
    %v888 = vld [vmem:[%s7 + $0x60] sm:$0xff]
    %v889 = vld [vmem:[%s7 + $0x68] sm:$0xff]
    %v890 = vld [vmem:[%s7 + $0x70] sm:$0xff]
    %v891 = vld [vmem:[%s7 + $0x78] sm:$0xff]
    %v892 = vld [vmem:[%s8] sm:$0x1]
    %v894 = vlaneseq
    %v895 = vshrl.u32 %v894, 7
    %v896 = vsub.s32 0, %v895
    %v897 = vrot.slane %v892, %v896
    %899 = vmatprep.subr.mxu0 0.0
    %900 = vmatpush1.msra.mxu0 %v876
    %901 = vmatprep.subr.mxu0 0.0
    %902 = vmatpush1.msra.mxu0 %v877
    %903 = vmatprep.subr.mxu0 0.0
    %904 = vmatpush1.msra.mxu0 %v878
    %905 = vmatprep.subr.mxu0 0.0
    %906 = vmatpush1.msra.mxu0 %v879
    %907 = vmatprep.subr.mxu0 0.0
    %908 = vmatpush1.msra.mxu0 %v880
    %909 = vmatprep.subr.mxu0 0.0
    %910 = vmatpush1.msra.mxu0 %v881
    %911 = vmatprep.subr.mxu0 0.0
    %912 = vmatpush1.msra.mxu0 %v882
    %913 = vmatprep.subr.mxu0 0.0
    %914 = vmatpush1.msra.mxu0 %v883
    %915 = vmatprep.subr.mxu0 0.0
    %916 = vmatpush1.msra.mxu0 %v884
    %917 = vmatprep.subr.mxu0 0.0
    %918 = vmatpush1.msra.mxu0 %v885
    %919 = vmatprep.subr.mxu0 0.0
    %920 = vmatpush1.msra.mxu0 %v886
    %921 = vmatprep.subr.mxu0 0.0
    %922 = vmatpush1.msra.mxu0 %v887
    %923 = vmatprep.subr.mxu0 0.0
    %924 = vmatpush1.msra.mxu0 %v888
    %925 = vmatprep.subr.mxu0 0.0
    %926 = vmatpush1.msra.mxu0 %v889
    %927 = vmatprep.subr.mxu0 0.0
    %928 = vmatpush1.msra.mxu0 %v890
    %929 = vmatprep.subr.mxu0 0.0
    %930 = vmatpush1.msra.mxu0 %v891
    %931 = vmatprep.subr.mxu0 0.0
    %932 = vmatpush1.msra.mxu0 0.0
    %933 = vmatprep.subr.mxu0 0.0
    %934 = vmatpush1.msra.mxu0 0.0
    %935 = vmatprep.subr.mxu0 0.0
    %936 = vmatpush1.msra.mxu0 0.0
    %937 = vmatprep.subr.mxu0 0.0
    %938 = vmatpush1.msra.mxu0 0.0
    %939 = vmatprep.subr.mxu0 0.0
    %940 = vmatpush1.msra.mxu0 0.0
    %941 = vmatprep.subr.mxu0 0.0
    %942 = vmatpush1.msra.mxu0 0.0
    %943 = vmatprep.subr.mxu0 0.0
    %944 = vmatpush1.msra.mxu0 0.0
    %945 = vmatprep.subr.mxu0 0.0
    %946 = vmatpush1.msra.mxu0 0.0
    %947 = vmatprep.subr.mxu0 0.0
    %948 = vmatpush1.msra.mxu0 0.0
    %949 = vmatprep.subr.mxu0 0.0
    %950 = vmatpush1.msra.mxu0 0.0
    %951 = vmatprep.subr.mxu0 0.0
    %952 = vmatpush1.msra.mxu0 0.0
    %953 = vmatprep.subr.mxu0 0.0
    %954 = vmatpush1.msra.mxu0 0.0
    %955 = vmatprep.subr.mxu0 0.0
    %956 = vmatpush1.msra.mxu0 0.0
    %957 = vmatprep.subr.mxu0 0.0
    %958 = vmatpush1.msra.mxu0 0.0
    %959 = vmatprep.subr.mxu0 0.0
    %960 = vmatpush1.msra.mxu0 0.0
    %961 = vmatprep.subr.mxu0 0.0
    %962 = vmatpush1.msra.mxu0 0.0
    %963 = vmatprep.mubr.f32.mxu0 0.0
    %964 = vmatmul.mubr.f32.gmra.mrb[0].mxu0 %v851
    %v965 = vpop.f32.mrb[0].mxu0
    %v966 = vadd.f32 %v897, %v965
    %v967 = vpop.f32.mrb[0].mxu0
    %968 = vmatprep.mubr.f32.mxu0 0.0
    %969 = vmatmul.mubr.f32.gmra.mrb[0].mxu0 %v852
    %v970 = vpop.f32.mrb[0].mxu0
    %v971 = vadd.f32 %v897, %v970
    %v972 = vpop.f32.mrb[0].mxu0
    %973 = vmatprep.mubr.f32.mxu0 0.0
    %974 = vmatmul.mubr.f32.gmra.mrb[0].mxu0 %v853
    %v975 = vpop.f32.mrb[0].mxu0
    %v976 = vadd.f32 %v897, %v975
    %v977 = vpop.f32.mrb[0].mxu0
    %978 = vmatprep.mubr.f32.mxu0 0.0
    %979 = vmatmul.mubr.f32.gmra.mrb[0].mxu0 %v854
    %v980 = vpop.f32.mrb[0].mxu0
    %v981 = vadd.f32 %v897, %v980
    %v982 = vpop.f32.mrb[0].mxu0
    %983 = vmatprep.mubr.f32.mxu0 0.0
    %984 = vmatmul.mubr.f32.gmra.mrb[0].mxu0 %v855
    %v985 = vpop.f32.mrb[0].mxu0
    %v986 = vadd.f32 %v897, %v985
    %v987 = vpop.f32.mrb[0].mxu0
    %988 = vmatprep.mubr.f32.mxu0 0.0
    %989 = vmatmul.mubr.f32.gmra.mrb[0].mxu0 %v856
    %v990 = vpop.f32.mrb[0].mxu0
    %v991 = vadd.f32 %v897, %v990
    %v992 = vpop.f32.mrb[0].mxu0
    %993 = vmatprep.mubr.f32.mxu0 0.0
    %994 = vmatmul.mubr.f32.gmra.mrb[0].mxu0 %v857
    %v995 = vpop.f32.mrb[0].mxu0
    %v996 = vadd.f32 %v897, %v995
    %v997 = vpop.f32.mrb[0].mxu0
    %998 = vmatprep.mubr.f32.mxu0 0.0
    %999 = vmatmul.mubr.f32.gmra.mrb[0].mxu0 %v858
    %v1000 = vpop.f32.mrb[0].mxu0
    %v1001 = vadd.f32 %v897, %v1000
    %v1002 = vpop.f32.mrb[0].mxu0
    %1003 = vmatprep.mubr.f32.mxu0 0.0
    %1004 = vmatmul.mubr.f32.gmra.mrb[0].mxu0 %v859
    %v1005 = vpop.f32.mrb[0].mxu0
    %v1006 = vadd.f32 %v897, %v1005
    %v1007 = vpop.f32.mrb[0].mxu0
    %1008 = vmatprep.mubr.f32.mxu0 0.0
    %1009 = vmatmul.mubr.f32.gmra.mrb[0].mxu0 %v860
    %v1010 = vpop.f32.mrb[0].mxu0
    %v1011 = vadd.f32 %v897, %v1010
    %v1012 = vpop.f32.mrb[0].mxu0
    %1013 = vmatprep.mubr.f32.mxu0 0.0
    %1014 = vmatmul.mubr.f32.gmra.mrb[0].mxu0 %v861
    %v1015 = vpop.f32.mrb[0].mxu0
    %v1016 = vadd.f32 %v897, %v1015
    %v1017 = vpop.f32.mrb[0].mxu0
    %1018 = vmatprep.mubr.f32.mxu0 0.0
    %1019 = vmatmul.mubr.f32.gmra.mrb[0].mxu0 %v862
    %v1020 = vpop.f32.mrb[0].mxu0
    %v1021 = vadd.f32 %v897, %v1020
    %v1022 = vpop.f32.mrb[0].mxu0
    %1023 = vmatprep.mubr.f32.mxu0 0.0
    %1024 = vmatmul.mubr.f32.gmra.mrb[0].mxu0 %v863
    %v1025 = vpop.f32.mrb[0].mxu0
    %v1026 = vadd.f32 %v897, %v1025
    %v1027 = vpop.f32.mrb[0].mxu0
    %1028 = vmatprep.mubr.f32.mxu0 0.0
    %1029 = vmatmul.mubr.f32.gmra.mrb[0].mxu0 %v864
    %v1030 = vpop.f32.mrb[0].mxu0
    %v1031 = vadd.f32 %v897, %v1030
    %v1032 = vpop.f32.mrb[0].mxu0
    %1033 = vmatprep.mubr.f32.mxu0 0.0
    %1034 = vmatmul.mubr.f32.gmra.mrb[0].mxu0 %v865
    %v1035 = vpop.f32.mrb[0].mxu0
    %v1036 = vadd.f32 %v897, %v1035
    %v1037 = vpop.f32.mrb[0].mxu0
    %1038 = vmatprep.mubr.f32.mxu0 0.0
    %1039 = vmatmul.mubr.f32.gmra.mrb[0].mxu0 %v866
    %v1040 = vpop.f32.mrb[0].mxu0
    %v1041 = vadd.f32 %v897, %v1040
    %v1042 = vpop.f32.mrb[0].mxu0
    %1043 = vmatprep.mubr.f32.mxu0 0.0
    %1044 = vmatmul.mubr.f32.gmra.mrb[0].mxu0 %v867
    %v1045 = vpop.f32.mrb[0].mxu0
    %v1046 = vadd.f32 %v897, %v1045
    %v1047 = vpop.f32.mrb[0].mxu0
    %1048 = vmatprep.mubr.f32.mxu0 0.0
    %1049 = vmatmul.mubr.f32.gmra.mrb[0].mxu0 %v868
    %v1050 = vpop.f32.mrb[0].mxu0
    %v1051 = vadd.f32 %v897, %v1050
    %v1052 = vpop.f32.mrb[0].mxu0
    %1053 = vmatprep.mubr.f32.mxu0 0.0
    %1054 = vmatmul.mubr.f32.gmra.mrb[0].mxu0 %v869
    %v1055 = vpop.f32.mrb[0].mxu0
    %v1056 = vadd.f32 %v897, %v1055
    %v1057 = vpop.f32.mrb[0].mxu0
    %1058 = vmatprep.mubr.f32.mxu0 0.0
    %1059 = vmatmul.mubr.f32.gmra.mrb[0].mxu0 %v870
    %v1060 = vpop.f32.mrb[0].mxu0
    %v1061 = vadd.f32 %v897, %v1060
    %v1062 = vpop.f32.mrb[0].mxu0
    %1063 = vmatprep.mubr.f32.mxu0 0.0
    %1064 = vmatmul.mubr.f32.gmra.mrb[0].mxu0 %v871
    %v1065 = vpop.f32.mrb[0].mxu0
    %v1066 = vadd.f32 %v897, %v1065
    %v1067 = vpop.f32.mrb[0].mxu0
    %1068 = vmatprep.mubr.f32.mxu0 0.0
    %1069 = vmatmul.mubr.f32.gmra.mrb[0].mxu0 %v872
    %v1070 = vpop.f32.mrb[0].mxu0
    %v1071 = vadd.f32 %v897, %v1070
    %v1072 = vpop.f32.mrb[0].mxu0
    %1073 = vmatprep.mubr.f32.mxu0 0.0
    %1074 = vmatmul.mubr.f32.gmra.mrb[0].mxu0 %v873
    %v1075 = vpop.f32.mrb[0].mxu0
    %v1076 = vadd.f32 %v897, %v1075
    %v1077 = vpop.f32.mrb[0].mxu0
    %1078 = vmatprep.mubr.f32.mxu0 0.0
    %1079 = vmatmul.mubr.f32.gmra.mrb[0].mxu0 %v874
    %v1080 = vpop.f32.mrb[0].mxu0
    %v1081 = vadd.f32 %v897, %v1080
    %v1082 = vpop.f32.mrb[0].mxu0
    %1083 = vmatprep.mubr.f32.mxu0 0.0
    %1084 = vmatmul.mubr.f32.gmra.mrb[0].mxu0 %v875
    %v1085 = vpop.f32.mrb[0].mxu0
    %v1086 = vadd.f32 %v897, %v1085
    %v1087 = vpop.f32.mrb[0].mxu0
    %1088 = vdwg.mxu0
    %1089 = vst [vmem:[%s9] sm:$0xff] %v966
    %1090 = vst [vmem:[%s9 + $0x8] sm:$0xff] %v971
    %1091 = vst [vmem:[%s9 + $0x10] sm:$0xff] %v976
    %1092 = vst [vmem:[%s9 + $0x18] sm:$0xff] %v981
    %1093 = vst [vmem:[%s9 + $0x20] sm:$0xff] %v986
    %1094 = vst [vmem:[%s9 + $0x28] sm:$0xff] %v991
    %1095 = vst [vmem:[%s9 + $0x30] sm:$0xff] %v996
    %1096 = vst [vmem:[%s9 + $0x38] sm:$0xff] %v1001
    %1097 = vst [vmem:[%s9 + $0x40] sm:$0xff] %v1006
    %1098 = vst [vmem:[%s9 + $0x48] sm:$0xff] %v1011
    %1099 = vst [vmem:[%s9 + $0x50] sm:$0xff] %v1016
    %1100 = vst [vmem:[%s9 + $0x58] sm:$0xff] %v1021
    %1101 = vst [vmem:[%s9 + $0x60] sm:$0xff] %v1026
    %1102 = vst [vmem:[%s9 + $0x68] sm:$0xff] %v1031
    %1103 = vst [vmem:[%s9 + $0x70] sm:$0xff] %v1036
    %1104 = vst [vmem:[%s9 + $0x78] sm:$0xff] %v1041
    %1105 = vst [vmem:[%s9 + $0x80] sm:$0xff] %v1046
    %1106 = vst [vmem:[%s9 + $0x88] sm:$0xff] %v1051
    %1107 = vst [vmem:[%s9 + $0x90] sm:$0xff] %v1056
    %1108 = vst [vmem:[%s9 + $0x98] sm:$0xff] %v1061
    %1109 = vst [vmem:[%s9 + $0xa0] sm:$0xff] %v1066
    %1110 = vst [vmem:[%s9 + $0xa8] sm:$0xff] %v1071
    %1111 = vst [vmem:[%s9 + $0xb0] sm:$0xff] %v1076
    %1112 = vst [vmem:[%s9 + $0xb8] sm:$0xff] %v1081
    %1113 = vst [vmem:[%s9 + $0xc0] sm:$0xff] %v1086
    // Predicated region
    $region50: #{discriminator_forward.1} parent=1 // pred_check
      _
    $region51: #{discriminator_forward.1} parent=1 // pred_check_branch
      %1115 = sbr.rel (0) target = $region53
    $region52: #{discriminator_forward.1} parent=1 // pred_region
      _
    $region53: #{discriminator_forward.1} parent=1 // pred_fallthru
      _
    // Predicated region
    $region54: #{discriminator_forward.1} parent=1 // pred_check
      _
    $region55: #{discriminator_forward.1} parent=1 // pred_check_branch
      %1117 = sbr.rel (0) target = $region57
    $region56: #{discriminator_forward.1} parent=1 // pred_region
      _
    $region57: #{discriminator_forward.1} parent=1 // pred_fallthru
      _
    %1118 = vsyncpa [#allocation3], 1
    %1119 = vsyncpa [#allocation5], 1

</llo_original>
